<compile_context>
chip_gen: v5e
topology: v5e:2x2
jax: 0.10.0
libtpu: 0.0.40
codegen_flags: <defaults>
</compile_context>

<pallas_src>
import functools

import jax
import jax.numpy as jnp
from jax.experimental import pallas as pl
from jax.experimental.pallas import tpu as pltpu

EPS = 1e-5
LANE = 128


# ----------------------------------------------------------------------------
# In-kernel helpers
# ----------------------------------------------------------------------------
def _conv3_lane(x_bf16, w_bf16):
    """Conv1d(k=3, stride=1, pad=1) along the lane axis of one sample.

    x_bf16: (Cin, Lp) bf16, zero for columns >= L (and Lp >= L + 1).
    w_bf16: (3*Cout, Cin) bf16 -- rows [k*Cout:(k+1)*Cout] are tap k.
    Returns (Cout, Lp) float32; columns >= L are don't-care.
    """
    cout = w_bf16.shape[0] // 3
    lp = x_bf16.shape[-1]
    # One wide MXU matmul for all 3 taps (fp32 accumulation).
    y = jnp.dot(w_bf16, x_bf16, preferred_element_type=jnp.float32)  # (3C, Lp)
    y0 = y[0:cout]
    y1 = y[cout:2 * cout]
    y2 = y[2 * cout:3 * cout]
    # out[:, l] = y0[:, l-1] + y1[:, l] + y2[:, l+1].
    # Wrapped columns land in (or come from) the zero-padded region >= L.
    return (y1
            + pltpu.roll(y0, shift=1, axis=1)
            + pltpu.roll(y2, shift=lp - 1, axis=1))


def _masked_stats(h_f32, L):
    """Per-channel sum and sum-of-squares over the valid columns [0, L)."""
    lane = jax.lax.broadcasted_iota(jnp.int32, h_f32.shape, 1)
    hm = jnp.where(lane < L, h_f32, 0.0)
    return (jnp.sum(hm, axis=1, keepdims=True),
            jnp.sum(hm * hm, axis=1, keepdims=True))


# ----------------------------------------------------------------------------
# Kernels (grid over batch; one (C, Lp) sample per step)
# ----------------------------------------------------------------------------
def _conv1_kernel(x_ref, w_ref, h_ref, s_ref, ss_ref, *, L):
    # conv1 (no bias) + per-sample partial BN1 statistics.
    h = _conv3_lane(x_ref[...], w_ref[...])
    s, ss = _masked_stats(h, L)
    s_ref[...] = s
    ss_ref[...] = ss
    h_ref[...] = h.astype(h_ref.dtype)


def _bn_relu_conv2_kernel(h1_ref, sc_ref, sh_ref, w_ref, h2_ref, s_ref, ss_ref,
                          *, L):
    # bn1 (folded scale/shift) + relu + conv2 + per-sample partial BN2 stats.
    a = h1_ref[...].astype(jnp.float32) * sc_ref[...] + sh_ref[...]
    a = jnp.maximum(a, 0.0)
    lane = jax.lax.broadcasted_iota(jnp.int32, a.shape, 1)
    a = jnp.where(lane < L, a, 0.0)      # restore conv2's implicit zero padding
    h2 = _conv3_lane(a.astype(jnp.bfloat16), w_ref[...])
    s, ss = _masked_stats(h2, L)
    s_ref[...] = s
    ss_ref[...] = ss
    h2_ref[...] = h2.astype(h2_ref.dtype)


def _bn_add_relu_kernel(h2_ref, x_ref, sc_ref, sh_ref, o_ref):
    # bn2 (folded) + identity residual + relu.
    o = h2_ref[...].astype(jnp.float32) * sc_ref[...] + sh_ref[...] + x_ref[...]
    o_ref[...] = jnp.maximum(o, 0.0)


# ----------------------------------------------------------------------------
# Wrapper
# ----------------------------------------------------------------------------
def _fold_bn(s, ss, gamma, beta, count):
    """Fold batch statistics + (gamma, beta) into per-channel scale/shift."""
    total = jnp.sum(s[:, :, 0], axis=0)            # (C,)
    total_sq = jnp.sum(ss[:, :, 0], axis=0)        # (C,)
    mean = total / count
    var = jnp.maximum(total_sq / count - mean * mean, 0.0)   # biased, fp32 acc
    scale = gamma * jax.lax.rsqrt(var + EPS)
    shift = beta - mean * scale
    return (scale.reshape(-1, 1).astype(jnp.float32),
            shift.reshape(-1, 1).astype(jnp.float32))


@jax.jit
def basic_block_1d(x_ncl, params):
    """x_ncl: (N, C, L) float32, PyTorch NCL layout. Returns (N, C, L)."""
    w1, b1, g1, be1, w2, b2, g2, be2 = params
    del b1, b2  # per-channel conv bias is cancelled exactly by batch-stat BN

    N, C, L = x_ncl.shape
    # Lane-dense length pad; Lp >= L + 1 guarantees a real zero column for the
    # k=3 conv halo on both rolled taps.
    Lp = ((L + 1 + LANE - 1) // LANE) * LANE

    x_pad = jnp.pad(x_ncl.astype(jnp.float32), ((0, 0), (0, 0), (0, Lp - L)))
    x_bf = x_pad.astype(jnp.bfloat16)

    def fuse_taps(w):  # (Cout, Cin, 3) -> (3*Cout, Cin) bf16
        return jnp.transpose(w, (2, 0, 1)).reshape(3 * C, C).astype(jnp.bfloat16)

    w1f, w2f = fuse_taps(w1), fuse_taps(w2)

    cparams = pltpu.CompilerParams(
        dimension_semantics=("parallel",),
        vmem_limit_bytes=32 * 1024 * 1024,
    )

    act_spec = pl.BlockSpec((None, C, Lp), lambda n: (n, 0, 0))
    stat_spec = pl.BlockSpec((None, C, 1), lambda n: (n, 0, 0))
    w_spec = pl.BlockSpec((3 * C, C), lambda n: (0, 0))
    vec_spec = pl.BlockSpec((C, 1), lambda n: (0, 0))

    # Pass 1: conv1 + partial BN1 stats.
    h1, s1, ss1 = pl.pallas_call(
        functools.partial(_conv1_kernel, L=L),
        grid=(N,),
        in_specs=[act_spec, w_spec],
        out_specs=[act_spec, stat_spec, stat_spec],
        out_shape=[jax.ShapeDtypeStruct((N, C, Lp), jnp.bfloat16),
                   jax.ShapeDtypeStruct((N, C, 1), jnp.float32),
                   jax.ShapeDtypeStruct((N, C, 1), jnp.float32)],
        compiler_params=cparams,
    )(x_bf, w1f)

    scale1, shift1 = _fold_bn(s1, ss1, g1, be1, N * L)

    # Pass 2: bn1 + relu + conv2 + partial BN2 stats.
    h2, s2, ss2 = pl.pallas_call(
        functools.partial(_bn_relu_conv2_kernel, L=L),
        grid=(N,),
        in_specs=[act_spec, vec_spec, vec_spec, w_spec],
        out_specs=[act_spec, stat_spec, stat_spec],
        out_shape=[jax.ShapeDtypeStruct((N, C, Lp), jnp.bfloat16),
                   jax.ShapeDtypeStruct((N, C, 1), jnp.float32),
                   jax.ShapeDtypeStruct((N, C, 1), jnp.float32)],
        compiler_params=cparams,
    )(h1, scale1, shift1, w2f)

    scale2, shift2 = _fold_bn(s2, ss2, g2, be2, N * L)

    # Pass 3: bn2 + residual + relu.
    out_pad = pl.pallas_call(
        _bn_add_relu_kernel,
        grid=(N,),
        in_specs=[act_spec, act_spec, vec_spec, vec_spec],
        out_specs=act_spec,
        out_shape=jax.ShapeDtypeStruct((N, C, Lp), jnp.float32),
        compiler_params=cparams,
    )(h2, x_pad, scale2, shift2)

    return out_pad[:, :, :L]


# ----------------------------------------------------------------------------
# Pure-JAX fp32 reference (mirrors the PyTorch module, including conv biases)
# ----------------------------------------------------------------------------
def _reference(x_ncl, params):
    w1, b1, g1, be1, w2, b2, g2, be2 = params

    def conv(x, w, b):
        y = jax.lax.conv_general_dilated(
            x, w, window_strides=(1,), padding=((1, 1),),
            dimension_numbers=("NCH", "OIH", "NCH"))
        return y + b[None, :, None]

    def bn(x, g, be):
        mean = jnp.mean(x, axis=(0, 2), keepdims=True)
        var = jnp.mean((x - mean) ** 2, axis=(0, 2), keepdims=True)
        return (x - mean) * jax.lax.rsqrt(var + EPS) * g[None, :, None] \
            + be[None, :, None]

    h = jnp.maximum(bn(conv(x_ncl, w1, b1), g1, be1), 0.0)
    h = bn(conv(h, w2, b2), g2, be2) + x_ncl
    return jnp.maximum(h, 0.0)


if __name__ == "__main__":
    N, C, L = 2, 8, 16   # inplanes == planes == 8, stride=1, no downsample
    key = jax.random.PRNGKey(0)
    ks = jax.random.split(key, 9)

    x = jax.random.normal(ks[0], (N, C, L), jnp.float32)
    w1 = jax.random.normal(ks[1], (C, C, 3), jnp.float32) * 0.2
    b1 = jax.random.normal(ks[2], (C,), jnp.float32) * 0.1
    g1 = 1.0 + 0.1 * jax.random.normal(ks[3], (C,), jnp.float32)
    be1 = 0.1 * jax.random.normal(ks[4], (C,), jnp.float32)
    w2 = jax.random.normal(ks[5], (C, C, 3), jnp.float32) * 0.2
    b2 = jax.random.normal(ks[6], (C,), jnp.float32) * 0.1
    g2 = 1.0 + 0.1 * jax.random.normal(ks[7], (C,), jnp.float32)
    be2 = 0.1 * jax.random.normal(ks[8], (C,), jnp.float32)
    params = (w1, b1, g1, be1, w2, b2, g2, be2)

    out = basic_block_1d(x, params)
    jax.block_until_ready(out)

    ref = _reference(x, params)
    assert out.shape == (N, C, L)
    # bf16 MXU operands (fp32 accumulation) -> ~1% class tolerance vs fp32 ref.
    assert jnp.allclose(out, ref, atol=3e-2, rtol=3e-2), "mismatch vs reference"
    print("KERNEL_OK")
</pallas_src>

<mosaic_0001>
module attributes {stable_mosaic.version = 11 : i64} {
  func.func @_conv1_kernel(%arg0: i32, %arg1: memref<1x8x128xbf16, #tpu.memory_space<vmem>>, %arg2: memref<24x8xbf16, #tpu.memory_space<vmem>>, %arg3: memref<1x8x128xbf16, #tpu.memory_space<vmem>>, %arg4: memref<1x8x1xf32, #tpu.memory_space<vmem>>, %arg5: memref<1x8x1xf32, #tpu.memory_space<vmem>>) attributes {dimension_semantics = [#tpu.dimension_semantics<parallel>], iteration_bounds = array<i64: 2>, scalar_prefetch = 0 : i64, scratch_operands = 0 : i64, tpu.core_type = #tpu.core_type<tc>, window_params = [{transform_indices = @transform_0, window_bounds = array<i64: 1, 8, 128>}, {pipeline_mode = #tpu.pipeline_mode<synchronous>, transform_indices = @transform_1, window_bounds = array<i64: 24, 8>}, {transform_indices = @transform_2, window_bounds = array<i64: 1, 8, 128>}, {transform_indices = @transform_3, window_bounds = array<i64: 1, 8, 1>}, {transform_indices = @transform_4, window_bounds = array<i64: 1, 8, 1>}]} {
    %c0 = arith.constant 0 : index
    %c0_0 = arith.constant 0 : index
    %c0_1 = arith.constant 0 : index
    %0 = vector.load %arg1[%c0, %c0_0, %c0_1] : memref<1x8x128xbf16, #tpu.memory_space<vmem>>, vector<1x8x128xbf16>
    %1 = vector.shape_cast %0 : vector<1x8x128xbf16> to vector<8x128xbf16>
    %c0_2 = arith.constant 0 : index
    %c0_3 = arith.constant 0 : index
    %2 = vector.load %arg2[%c0_2, %c0_3] : memref<24x8xbf16, #tpu.memory_space<vmem>>, vector<24x8xbf16>
    %cst = arith.constant dense<0.000000e+00> : vector<24x128xf32>
    %3 = tpu.matmul %2, %1, %cst {dimension_numbers = #tpu.dot_dimension_numbers<[1], [0], [0], [1], [0, 0, 1, 1], [], []>} : vector<24x8xbf16>, vector<8x128xbf16>, vector<24x128xf32> -> vector<24x128xf32>
    %4 = vector.extract_strided_slice %3 {offsets = [0, 0], sizes = [8, 128], strides = [1, 1]} : vector<24x128xf32> to vector<8x128xf32>
    %5 = vector.extract_strided_slice %3 {offsets = [8, 0], sizes = [8, 128], strides = [1, 1]} : vector<24x128xf32> to vector<8x128xf32>
    %6 = vector.extract_strided_slice %3 {offsets = [16, 0], sizes = [8, 128], strides = [1, 1]} : vector<24x128xf32> to vector<8x128xf32>
    %c1_i32 = arith.constant 1 : i32
    %7 = tpu.dynamic_rotate %4 by %c1_i32 dim 1 : vector<8x128xf32>, i32 -> vector<8x128xf32>
    %8 = arith.addf %5, %7 : vector<8x128xf32>
    %c127_i32 = arith.constant 127 : i32
    %9 = tpu.dynamic_rotate %6 by %c127_i32 dim 1 : vector<8x128xf32>, i32 -> vector<8x128xf32>
    %10 = arith.addf %8, %9 : vector<8x128xf32>
    %11 = tpu.iota {dimensions = array<i32: 1>} : vector<8x128xi32>
    %c16_i32 = arith.constant 16 : i32
    %12 = vector.broadcast %c16_i32 : i32 to vector<8x128xi32>
    %13 = arith.cmpi slt, %11, %12 : vector<8x128xi32>
    %cst_4 = arith.constant 0.000000e+00 : f32
    %14 = vector.broadcast %cst_4 : f32 to vector<8x128xf32>
    %15 = arith.select %13, %10, %14 : vector<8x128xi1>, vector<8x128xf32>
    %cst_5 = arith.constant dense<0.000000e+00> : vector<8xf32>
    %16 = vector.multi_reduction <add>, %15, %cst_5 [1] : vector<8x128xf32> to vector<8xf32>
    %17 = vector.shape_cast %16 : vector<8xf32> to vector<8x1xf32>
    %18 = arith.mulf %15, %15 : vector<8x128xf32>
    %cst_6 = arith.constant dense<0.000000e+00> : vector<8xf32>
    %19 = vector.multi_reduction <add>, %18, %cst_6 [1] : vector<8x128xf32> to vector<8xf32>
    %20 = vector.shape_cast %19 : vector<8xf32> to vector<8x1xf32>
    %c0_7 = arith.constant 0 : index
    %c0_8 = arith.constant 0 : index
    %c0_9 = arith.constant 0 : index
    %21 = vector.load %arg4[%c0_7, %c0_8, %c0_9] : memref<1x8x1xf32, #tpu.memory_space<vmem>>, vector<1x8x1xf32>
    %22 = vector.shape_cast %21 : vector<1x8x1xf32> to vector<8x1xf32>
    %23 = vector.shape_cast %17 : vector<8x1xf32> to vector<1x8x1xf32>
    tpu.vector_store %arg4[%c0_7, %c0_8, %c0_9], %23 {strides = array<i32>} : memref<1x8x1xf32, #tpu.memory_space<vmem>>, vector<1x8x1xf32>,
    %c0_10 = arith.constant 0 : index
    %c0_11 = arith.constant 0 : index
    %c0_12 = arith.constant 0 : index
    %24 = vector.load %arg5[%c0_10, %c0_11, %c0_12] : memref<1x8x1xf32, #tpu.memory_space<vmem>>, vector<1x8x1xf32>
    %25 = vector.shape_cast %24 : vector<1x8x1xf32> to vector<8x1xf32>
    %26 = vector.shape_cast %20 : vector<8x1xf32> to vector<1x8x1xf32>
    tpu.vector_store %arg5[%c0_10, %c0_11, %c0_12], %26 {strides = array<i32>} : memref<1x8x1xf32, #tpu.memory_space<vmem>>, vector<1x8x1xf32>,
    %27 = arith.truncf %10 : vector<8x128xf32> to vector<8x128xbf16>
    %c0_13 = arith.constant 0 : index
    %c0_14 = arith.constant 0 : index
    %c0_15 = arith.constant 0 : index
    %28 = vector.load %arg3[%c0_13, %c0_14, %c0_15] : memref<1x8x128xbf16, #tpu.memory_space<vmem>>, vector<1x8x128xbf16>
    %29 = vector.shape_cast %28 : vector<1x8x128xbf16> to vector<8x128xbf16>
    %30 = vector.shape_cast %27 : vector<8x128xbf16> to vector<1x8x128xbf16>
    tpu.vector_store %arg3[%c0_13, %c0_14, %c0_15], %30 {strides = array<i32>} : memref<1x8x128xbf16, #tpu.memory_space<vmem>>, vector<1x8x128xbf16>,
    return
  }
  func.func @transform_0(%arg0: i32) -> (i32, i32, i32) {
    %c0_i32 = arith.constant 0 : i32
    %c0_i32_0 = arith.constant 0 : i32
    %c0_i32_1 = arith.constant 0 : i32
    return %arg0, %c0_i32, %c0_i32_0 : i32, i32, i32
  }
  func.func @transform_1(%arg0: i32) -> (i32, i32) {
    %c0_i32 = arith.constant 0 : i32
    %c0_i32_0 = arith.constant 0 : i32
    %c0_i32_1 = arith.constant 0 : i32
    return %c0_i32, %c0_i32_0 : i32, i32
  }
  func.func @transform_2(%arg0: i32) -> (i32, i32, i32) {
    %c0_i32 = arith.constant 0 : i32
    %c0_i32_0 = arith.constant 0 : i32
    %c0_i32_1 = arith.constant 0 : i32
    return %arg0, %c0_i32, %c0_i32_0 : i32, i32, i32
  }
  func.func @transform_3(%arg0: i32) -> (i32, i32, i32) {
    %c0_i32 = arith.constant 0 : i32
    %c0_i32_0 = arith.constant 0 : i32
    %c0_i32_1 = arith.constant 0 : i32
    return %arg0, %c0_i32, %c0_i32_0 : i32, i32, i32
  }
  func.func @transform_4(%arg0: i32) -> (i32, i32, i32) {
    %c0_i32 = arith.constant 0 : i32
    %c0_i32_0 = arith.constant 0 : i32
    %c0_i32_1 = arith.constant 0 : i32
    return %arg0, %c0_i32, %c0_i32_0 : i32, i32, i32
  }
}

module attributes {stable_mosaic.version = 11 : i64} {
  func.func @_bn_relu_conv2_kernel(%arg0: i32, %arg1: memref<1x8x128xbf16, #tpu.memory_space<vmem>>, %arg2: memref<8x1xf32, #tpu.memory_space<vmem>>, %arg3: memref<8x1xf32, #tpu.memory_space<vmem>>, %arg4: memref<24x8xbf16, #tpu.memory_space<vmem>>, %arg5: memref<1x8x128xbf16, #tpu.memory_space<vmem>>, %arg6: memref<1x8x1xf32, #tpu.memory_space<vmem>>, %arg7: memref<1x8x1xf32, #tpu.memory_space<vmem>>) attributes {dimension_semantics = [#tpu.dimension_semantics<parallel>], iteration_bounds = array<i64: 2>, scalar_prefetch = 0 : i64, scratch_operands = 0 : i64, tpu.core_type = #tpu.core_type<tc>, window_params = [{transform_indices = @transform_0, window_bounds = array<i64: 1, 8, 128>}, {pipeline_mode = #tpu.pipeline_mode<synchronous>, transform_indices = @transform_1, window_bounds = array<i64: 8, 1>}, {pipeline_mode = #tpu.pipeline_mode<synchronous>, transform_indices = @transform_2, window_bounds = array<i64: 8, 1>}, {pipeline_mode = #tpu.pipeline_mode<synchronous>, transform_indices = @transform_3, window_bounds = array<i64: 24, 8>}, {transform_indices = @transform_4, window_bounds = array<i64: 1, 8, 128>}, {transform_indices = @transform_5, window_bounds = array<i64: 1, 8, 1>}, {transform_indices = @transform_6, window_bounds = array<i64: 1, 8, 1>}]} {
    %c0 = arith.constant 0 : index
    %c0_0 = arith.constant 0 : index
    %c0_1 = arith.constant 0 : index
    %0 = vector.load %arg1[%c0, %c0_0, %c0_1] : memref<1x8x128xbf16, #tpu.memory_space<vmem>>, vector<1x8x128xbf16>
    %1 = vector.shape_cast %0 : vector<1x8x128xbf16> to vector<8x128xbf16>
    %2 = arith.extf %1 : vector<8x128xbf16> to vector<8x128xf32>
    %c0_2 = arith.constant 0 : index
    %c0_3 = arith.constant 0 : index
    %3 = vector.load %arg2[%c0_2, %c0_3] : memref<8x1xf32, #tpu.memory_space<vmem>>, vector<8x1xf32>
    %4 = vector.broadcast %3 : vector<8x1xf32> to vector<8x128xf32>
    %5 = arith.mulf %2, %4 : vector<8x128xf32>
    %c0_4 = arith.constant 0 : index
    %c0_5 = arith.constant 0 : index
    %6 = vector.load %arg3[%c0_4, %c0_5] : memref<8x1xf32, #tpu.memory_space<vmem>>, vector<8x1xf32>
    %7 = vector.broadcast %6 : vector<8x1xf32> to vector<8x128xf32>
    %8 = arith.addf %5, %7 : vector<8x128xf32>
    %cst = arith.constant 0.000000e+00 : f32
    %9 = vector.broadcast %cst : f32 to vector<8x128xf32>
    %10 = arith.maximumf %8, %9 : vector<8x128xf32>
    %11 = tpu.iota {dimensions = array<i32: 1>} : vector<8x128xi32>
    %c16_i32 = arith.constant 16 : i32
    %12 = vector.broadcast %c16_i32 : i32 to vector<8x128xi32>
    %13 = arith.cmpi slt, %11, %12 : vector<8x128xi32>
    %cst_6 = arith.constant 0.000000e+00 : f32
    %14 = vector.broadcast %cst_6 : f32 to vector<8x128xf32>
    %15 = arith.select %13, %10, %14 : vector<8x128xi1>, vector<8x128xf32>
    %16 = arith.truncf %15 : vector<8x128xf32> to vector<8x128xbf16>
    %c0_7 = arith.constant 0 : index
    %c0_8 = arith.constant 0 : index
    %17 = vector.load %arg4[%c0_7, %c0_8] : memref<24x8xbf16, #tpu.memory_space<vmem>>, vector<24x8xbf16>
    %cst_9 = arith.constant dense<0.000000e+00> : vector<24x128xf32>
    %18 = tpu.matmul %17, %16, %cst_9 {dimension_numbers = #tpu.dot_dimension_numbers<[1], [0], [0], [1], [0, 0, 1, 1], [], []>} : vector<24x8xbf16>, vector<8x128xbf16>, vector<24x128xf32> -> vector<24x128xf32>
    %19 = vector.extract_strided_slice %18 {offsets = [0, 0], sizes = [8, 128], strides = [1, 1]} : vector<24x128xf32> to vector<8x128xf32>
    %20 = vector.extract_strided_slice %18 {offsets = [8, 0], sizes = [8, 128], strides = [1, 1]} : vector<24x128xf32> to vector<8x128xf32>
    %21 = vector.extract_strided_slice %18 {offsets = [16, 0], sizes = [8, 128], strides = [1, 1]} : vector<24x128xf32> to vector<8x128xf32>
    %c1_i32 = arith.constant 1 : i32
    %22 = tpu.dynamic_rotate %19 by %c1_i32 dim 1 : vector<8x128xf32>, i32 -> vector<8x128xf32>
    %23 = arith.addf %20, %22 : vector<8x128xf32>
    %c127_i32 = arith.constant 127 : i32
    %24 = tpu.dynamic_rotate %21 by %c127_i32 dim 1 : vector<8x128xf32>, i32 -> vector<8x128xf32>
    %25 = arith.addf %23, %24 : vector<8x128xf32>
    %26 = tpu.iota {dimensions = array<i32: 1>} : vector<8x128xi32>
    %c16_i32_10 = arith.constant 16 : i32
    %27 = vector.broadcast %c16_i32_10 : i32 to vector<8x128xi32>
    %28 = arith.cmpi slt, %26, %27 : vector<8x128xi32>
    %cst_11 = arith.constant 0.000000e+00 : f32
    %29 = vector.broadcast %cst_11 : f32 to vector<8x128xf32>
    %30 = arith.select %28, %25, %29 : vector<8x128xi1>, vector<8x128xf32>
    %cst_12 = arith.constant dense<0.000000e+00> : vector<8xf32>
    %31 = vector.multi_reduction <add>, %30, %cst_12 [1] : vector<8x128xf32> to vector<8xf32>
    %32 = vector.shape_cast %31 : vector<8xf32> to vector<8x1xf32>
    %33 = arith.mulf %30, %30 : vector<8x128xf32>
    %cst_13 = arith.constant dense<0.000000e+00> : vector<8xf32>
    %34 = vector.multi_reduction <add>, %33, %cst_13 [1] : vector<8x128xf32> to vector<8xf32>
    %35 = vector.shape_cast %34 : vector<8xf32> to vector<8x1xf32>
    %c0_14 = arith.constant 0 : index
    %c0_15 = arith.constant 0 : index
    %c0_16 = arith.constant 0 : index
    %36 = vector.load %arg6[%c0_14, %c0_15, %c0_16] : memref<1x8x1xf32, #tpu.memory_space<vmem>>, vector<1x8x1xf32>
    %37 = vector.shape_cast %36 : vector<1x8x1xf32> to vector<8x1xf32>
    %38 = vector.shape_cast %32 : vector<8x1xf32> to vector<1x8x1xf32>
    tpu.vector_store %arg6[%c0_14, %c0_15, %c0_16], %38 {strides = array<i32>} : memref<1x8x1xf32, #tpu.memory_space<vmem>>, vector<1x8x1xf32>,
    %c0_17 = arith.constant 0 : index
    %c0_18 = arith.constant 0 : index
    %c0_19 = arith.constant 0 : index
    %39 = vector.load %arg7[%c0_17, %c0_18, %c0_19] : memref<1x8x1xf32, #tpu.memory_space<vmem>>, vector<1x8x1xf32>
    %40 = vector.shape_cast %39 : vector<1x8x1xf32> to vector<8x1xf32>
    %41 = vector.shape_cast %35 : vector<8x1xf32> to vector<1x8x1xf32>
    tpu.vector_store %arg7[%c0_17, %c0_18, %c0_19], %41 {strides = array<i32>} : memref<1x8x1xf32, #tpu.memory_space<vmem>>, vector<1x8x1xf32>,
    %42 = arith.truncf %25 : vector<8x128xf32> to vector<8x128xbf16>
    %c0_20 = arith.constant 0 : index
    %c0_21 = arith.constant 0 : index
    %c0_22 = arith.constant 0 : index
    %43 = vector.load %arg5[%c0_20, %c0_21, %c0_22] : memref<1x8x128xbf16, #tpu.memory_space<vmem>>, vector<1x8x128xbf16>
    %44 = vector.shape_cast %43 : vector<1x8x128xbf16> to vector<8x128xbf16>
    %45 = vector.shape_cast %42 : vector<8x128xbf16> to vector<1x8x128xbf16>
    tpu.vector_store %arg5[%c0_20, %c0_21, %c0_22], %45 {strides = array<i32>} : memref<1x8x128xbf16, #tpu.memory_space<vmem>>, vector<1x8x128xbf16>,
    return
  }
  func.func @transform_0(%arg0: i32) -> (i32, i32, i32) {
    %c0_i32 = arith.constant 0 : i32
    %c0_i32_0 = arith.constant 0 : i32
    %c0_i32_1 = arith.constant 0 : i32
    return %arg0, %c0_i32, %c0_i32_0 : i32, i32, i32
  }
  func.func @transform_1(%arg0: i32) -> (i32, i32) {
    %c0_i32 = arith.constant 0 : i32
    %c0_i32_0 = arith.constant 0 : i32
    %c0_i32_1 = arith.constant 0 : i32
    return %c0_i32, %c0_i32_0 : i32, i32
  }
  func.func @transform_2(%arg0: i32) -> (i32, i32) {
    %c0_i32 = arith.constant 0 : i32
    %c0_i32_0 = arith.constant 0 : i32
    %c0_i32_1 = arith.constant 0 : i32
    return %c0_i32, %c0_i32_0 : i32, i32
  }
  func.func @transform_3(%arg0: i32) -> (i32, i32) {
    %c0_i32 = arith.constant 0 : i32
    %c0_i32_0 = arith.constant 0 : i32
    %c0_i32_1 = arith.constant 0 : i32
    return %c0_i32, %c0_i32_0 : i32, i32
  }
  func.func @transform_4(%arg0: i32) -> (i32, i32, i32) {
    %c0_i32 = arith.constant 0 : i32
    %c0_i32_0 = arith.constant 0 : i32
    %c0_i32_1 = arith.constant 0 : i32
    return %arg0, %c0_i32, %c0_i32_0 : i32, i32, i32
  }
  func.func @transform_5(%arg0: i32) -> (i32, i32, i32) {
    %c0_i32 = arith.constant 0 : i32
    %c0_i32_0 = arith.constant 0 : i32
    %c0_i32_1 = arith.constant 0 : i32
    return %arg0, %c0_i32, %c0_i32_0 : i32, i32, i32
  }
  func.func @transform_6(%arg0: i32) -> (i32, i32, i32) {
    %c0_i32 = arith.constant 0 : i32
    %c0_i32_0 = arith.constant 0 : i32
    %c0_i32_1 = arith.constant 0 : i32
    return %arg0, %c0_i32, %c0_i32_0 : i32, i32, i32
  }
}

module attributes {stable_mosaic.version = 11 : i64} {
  func.func @_bn_add_relu_kernel(%arg0: i32, %arg1: memref<1x8x128xbf16, #tpu.memory_space<vmem>>, %arg2: memref<1x8x128xf32, #tpu.memory_space<vmem>>, %arg3: memref<8x1xf32, #tpu.memory_space<vmem>>, %arg4: memref<8x1xf32, #tpu.memory_space<vmem>>, %arg5: memref<1x8x128xf32, #tpu.memory_space<vmem>>) attributes {dimension_semantics = [#tpu.dimension_semantics<parallel>], iteration_bounds = array<i64: 2>, scalar_prefetch = 0 : i64, scratch_operands = 0 : i64, tpu.core_type = #tpu.core_type<tc>, window_params = [{transform_indices = @transform_0, window_bounds = array<i64: 1, 8, 128>}, {transform_indices = @transform_1, window_bounds = array<i64: 1, 8, 128>}, {pipeline_mode = #tpu.pipeline_mode<synchronous>, transform_indices = @transform_2, window_bounds = array<i64: 8, 1>}, {pipeline_mode = #tpu.pipeline_mode<synchronous>, transform_indices = @transform_3, window_bounds = array<i64: 8, 1>}, {transform_indices = @transform_4, window_bounds = array<i64: 1, 8, 128>}]} {
    %c0 = arith.constant 0 : index
    %c0_0 = arith.constant 0 : index
    %c0_1 = arith.constant 0 : index
    %0 = vector.load %arg1[%c0, %c0_0, %c0_1] : memref<1x8x128xbf16, #tpu.memory_space<vmem>>, vector<1x8x128xbf16>
    %1 = vector.shape_cast %0 : vector<1x8x128xbf16> to vector<8x128xbf16>
    %2 = arith.extf %1 : vector<8x128xbf16> to vector<8x128xf32>
    %c0_2 = arith.constant 0 : index
    %c0_3 = arith.constant 0 : index
    %3 = vector.load %arg3[%c0_2, %c0_3] : memref<8x1xf32, #tpu.memory_space<vmem>>, vector<8x1xf32>
    %4 = vector.broadcast %3 : vector<8x1xf32> to vector<8x128xf32>
    %5 = arith.mulf %2, %4 : vector<8x128xf32>
    %c0_4 = arith.constant 0 : index
    %c0_5 = arith.constant 0 : index
    %6 = vector.load %arg4[%c0_4, %c0_5] : memref<8x1xf32, #tpu.memory_space<vmem>>, vector<8x1xf32>
    %7 = vector.broadcast %6 : vector<8x1xf32> to vector<8x128xf32>
    %8 = arith.addf %5, %7 : vector<8x128xf32>
    %c0_6 = arith.constant 0 : index
    %c0_7 = arith.constant 0 : index
    %c0_8 = arith.constant 0 : index
    %9 = vector.load %arg2[%c0_6, %c0_7, %c0_8] : memref<1x8x128xf32, #tpu.memory_space<vmem>>, vector<1x8x128xf32>
    %10 = vector.shape_cast %9 : vector<1x8x128xf32> to vector<8x128xf32>
    %11 = arith.addf %8, %10 : vector<8x128xf32>
    %cst = arith.constant 0.000000e+00 : f32
    %12 = vector.broadcast %cst : f32 to vector<8x128xf32>
    %13 = arith.maximumf %11, %12 : vector<8x128xf32>
    %c0_9 = arith.constant 0 : index
    %c0_10 = arith.constant 0 : index
    %c0_11 = arith.constant 0 : index
    %14 = vector.load %arg5[%c0_9, %c0_10, %c0_11] : memref<1x8x128xf32, #tpu.memory_space<vmem>>, vector<1x8x128xf32>
    %15 = vector.shape_cast %14 : vector<1x8x128xf32> to vector<8x128xf32>
    %16 = vector.shape_cast %13 : vector<8x128xf32> to vector<1x8x128xf32>
    tpu.vector_store %arg5[%c0_9, %c0_10, %c0_11], %16 {strides = array<i32>} : memref<1x8x128xf32, #tpu.memory_space<vmem>>, vector<1x8x128xf32>,
    return
  }
  func.func @transform_0(%arg0: i32) -> (i32, i32, i32) {
    %c0_i32 = arith.constant 0 : i32
    %c0_i32_0 = arith.constant 0 : i32
    %c0_i32_1 = arith.constant 0 : i32
    return %arg0, %c0_i32, %c0_i32_0 : i32, i32, i32
  }
  func.func @transform_1(%arg0: i32) -> (i32, i32, i32) {
    %c0_i32 = arith.constant 0 : i32
    %c0_i32_0 = arith.constant 0 : i32
    %c0_i32_1 = arith.constant 0 : i32
    return %arg0, %c0_i32, %c0_i32_0 : i32, i32, i32
  }
  func.func @transform_2(%arg0: i32) -> (i32, i32) {
    %c0_i32 = arith.constant 0 : i32
    %c0_i32_0 = arith.constant 0 : i32
    %c0_i32_1 = arith.constant 0 : i32
    return %c0_i32, %c0_i32_0 : i32, i32
  }
  func.func @transform_3(%arg0: i32) -> (i32, i32) {
    %c0_i32 = arith.constant 0 : i32
    %c0_i32_0 = arith.constant 0 : i32
    %c0_i32_1 = arith.constant 0 : i32
    return %c0_i32, %c0_i32_0 : i32, i32
  }
  func.func @transform_4(%arg0: i32) -> (i32, i32, i32) {
    %c0_i32 = arith.constant 0 : i32
    %c0_i32_0 = arith.constant 0 : i32
    %c0_i32_1 = arith.constant 0 : i32
    return %arg0, %c0_i32, %c0_i32_0 : i32, i32, i32
  }
}

</mosaic_0001>

<llo_original>
// kernel: basic_block_1d.5
$region0: #{basic_block_1d.5}
  #allocation0 [shape = 'u32[]', space=smem, size = 0x4, offset = 0x4, fixed_abs, tag = 'smem constant byte address 0x4 - core index']
  #allocation1 [shape = 'u32[72,128]{1,0:T(1,128)}', space=vmem, size = 0x9000, scoped, tag = 'internal scratch']
  %s0 = inlined_call_operand.vmem [shape: bf16[2,8,128], index: 0, kind: input, shape index: {}]
  %s1 = inlined_call_operand.vmem [shape: f32[2,8,128], index: 1, kind: input, shape index: {}]
  %s2 = inlined_call_operand.vmem [shape: f32[8,1], index: 2, kind: input, shape index: {}]
  %s3 = inlined_call_operand.vmem [shape: f32[8,1], index: 3, kind: input, shape index: {}]
  %s4 = inlined_call_operand.hbm [shape: f32[2,8,128], index: 4, kind: output, shape index: {}]
  %s5 = sld [smem:[#allocation0]]
  $region49: #{basic_block_1d.5} parent=0
    _
  %s7 = ssub.s32 1, %s5
  %s8 = scalar_select 0, %s7, %s5
  $region1: #{basic_block_1d.5} parent=0
    #allocation2 [shape = 'u8[8192]{0}', space=vmem, size = 0x2000, scoped, tag = 'output window, operand 0']
    #allocation3 [shape = 's32[2]{0}', space=sflag, size = 0x8, scoped, tag = 'scoped memory for basic_block_1d.5']
    %9 = vsyncpa [#allocation3], 0
    %s10 = scalar_lea.sflag [#allocation3], 1
    %11 = vsyncpa %s10, 0
    loop: start=0, step=1, limit=4
    $region2: #{basic_block_1d.5} parent=1 // loop_pre_header
      _
    $region3: #{basic_block_1d.5} parent=1 // loop_header
      %s13 = sphi 0, %s17
      %p14 = scmp.ge.s32.totalorder %s13, 4
      %s23 = sphi 0, %s25
      %s26 = sphi 0, %s23
      %s27 = sphi 0, %s26
      %s43 = sphi 0, %s27
      %s49 = sphi 0, %s51
      %s52 = sphi 0, %s49
      %s53 = sphi 0, %s52
      %s69 = sphi 0, %s53
      %s73 = sphi 0, %s73
      %s75 = sphi 0, %s73
      %s76 = sphi 0, %s75
      %s90 = sphi 0, %s76
      %s94 = sphi 0, %s94
      %s96 = sphi 0, %s94
      %s97 = sphi 0, %s96
      %s111 = sphi 0, %s97
      %s117 = sphi 0, %s119
      %s120 = sphi 0, %s117
      %s121 = sphi 0, %s120
      %s137 = sphi 0, %s121
    $region4: #{basic_block_1d.5} parent=1 // loop_header_branch
      %16 = sbr.rel (%p14) target = $region8
    $region5: #{basic_block_1d.5} parent=1 // loop_body
      %s18 = ssub.s32 %s13, 1
      %s19 = ssub.s32 %s13, 2
      %s20 = sadd.s32 %s13, 1
      %s21 = ssub.s32 %s13, %s20
      %p22 = scmp.eq.s32.totalorder %s21, 0
      %s24 = sadd.s32 %s23, 1
      %s25 = scalar_select %p22, %s23, %s24
      %p28 = pneg %p22
      %p29 = scmp.eq.s32.totalorder %s13, 1
      %p30 = por %p28, %p29
      %p31 = scmp.ne.s32.totalorder %s23, %s26
      %p32 = scmp.eq.s32.totalorder %s13, 0
      %p33 = por %p31, %p32
      %p34 = scmp.ne.s32.totalorder %s23, %s26
      %p35 = scmp.eq.s32.totalorder %s18, 1
      %p36 = por %p34, %p35
      %p37 = scmp.ne.s32.totalorder %s26, %s27
      %p38 = scmp.eq.s32.totalorder %s18, 0
      %p39 = por %p37, %p38
      %p40 = scmp.ne.s32.totalorder %s26, %s27
      %p41 = scmp.eq.s32.totalorder %s19, 1
      %p42 = por %p40, %p41
      %p44 = scmp.ne.s32.totalorder %s27, %s43
      %p45 = scmp.eq.s32.totalorder %s19, 0
      %p46 = por %p44, %p45
      %s47 = ssub.s32 %s13, %s20
      %p48 = scmp.eq.s32.totalorder %s47, 0
      %s50 = sadd.s32 %s49, 1
      %s51 = scalar_select %p48, %s49, %s50
      %p54 = pneg %p48
      %p55 = scmp.eq.s32.totalorder %s13, 1
      %p56 = por %p54, %p55
      %p57 = scmp.ne.s32.totalorder %s49, %s52
      %p58 = scmp.eq.s32.totalorder %s13, 0
      %p59 = por %p57, %p58
      %p60 = scmp.ne.s32.totalorder %s49, %s52
      %p61 = scmp.eq.s32.totalorder %s18, 1
      %p62 = por %p60, %p61
      %p63 = scmp.ne.s32.totalorder %s52, %s53
      %p64 = scmp.eq.s32.totalorder %s18, 0
      %p65 = por %p63, %p64
      %p66 = scmp.ne.s32.totalorder %s52, %s53
      %p67 = scmp.eq.s32.totalorder %s19, 1
      %p68 = por %p66, %p67
      %p70 = scmp.ne.s32.totalorder %s53, %s69
      %p71 = scmp.eq.s32.totalorder %s19, 0
      %p72 = por %p70, %p71
      %s74 = sadd.s32 %s73, 1
      %p77 = scmp.eq.s32.totalorder %s13, 1
      %p78 = scmp.ne.s32.totalorder %s73, %s75
      %p79 = scmp.eq.s32.totalorder %s13, 0
      %p80 = por %p78, %p79
      %p81 = scmp.ne.s32.totalorder %s73, %s75
      %p82 = scmp.eq.s32.totalorder %s18, 1
      %p83 = por %p81, %p82
      %p84 = scmp.ne.s32.totalorder %s75, %s76
      %p85 = scmp.eq.s32.totalorder %s18, 0
      %p86 = por %p84, %p85
      %p87 = scmp.ne.s32.totalorder %s75, %s76
      %p88 = scmp.eq.s32.totalorder %s19, 1
      %p89 = por %p87, %p88
      %p91 = scmp.ne.s32.totalorder %s76, %s90
      %p92 = scmp.eq.s32.totalorder %s19, 0
      %p93 = por %p91, %p92
      %s95 = sadd.s32 %s94, 1
      %p98 = scmp.eq.s32.totalorder %s13, 1
      %p99 = scmp.ne.s32.totalorder %s94, %s96
      %p100 = scmp.eq.s32.totalorder %s13, 0
      %p101 = por %p99, %p100
      %p102 = scmp.ne.s32.totalorder %s94, %s96
      %p103 = scmp.eq.s32.totalorder %s18, 1
      %p104 = por %p102, %p103
      %p105 = scmp.ne.s32.totalorder %s96, %s97
      %p106 = scmp.eq.s32.totalorder %s18, 0
      %p107 = por %p105, %p106
      %p108 = scmp.ne.s32.totalorder %s96, %s97
      %p109 = scmp.eq.s32.totalorder %s19, 1
      %p110 = por %p108, %p109
      %p112 = scmp.ne.s32.totalorder %s97, %s111
      %p113 = scmp.eq.s32.totalorder %s19, 0
      %p114 = por %p112, %p113
      %s115 = ssub.s32 %s13, %s20
      %p116 = scmp.eq.s32.totalorder %s115, 0
      %s118 = sadd.s32 %s117, 1
      %s119 = scalar_select %p116, %s117, %s118
      %p122 = pneg %p116
      %p123 = scmp.eq.s32.totalorder %s13, 1
      %p124 = por %p122, %p123
      %p125 = scmp.ne.s32.totalorder %s117, %s120
      %p126 = scmp.eq.s32.totalorder %s13, 0
      %p127 = por %p125, %p126
      %p128 = scmp.ne.s32.totalorder %s117, %s120
      %p129 = scmp.eq.s32.totalorder %s18, 1
      %p130 = por %p128, %p129
      %p131 = scmp.ne.s32.totalorder %s120, %s121
      %p132 = scmp.eq.s32.totalorder %s18, 0
      %p133 = por %p131, %p132
      %p134 = scmp.ne.s32.totalorder %s120, %s121
      %p135 = scmp.eq.s32.totalorder %s19, 1
      %p136 = por %p134, %p135
      %p138 = scmp.ne.s32.totalorder %s121, %s137
      %p139 = scmp.eq.s32.totalorder %s19, 0
      %p140 = por %p138, %p139
      %p141 = scmp.le.s32.totalorder 1, %s13
      %p142 = scmp.lt.s32.totalorder %s13, 3
      %p143 = pnand %p141, %p142
      %p144 = pneg %p143
      // Predicated region
      $region9: #{basic_block_1d.5} parent=5 // pred_check
        _
      $region10: #{basic_block_1d.5} parent=5 // pred_check_branch
        %146 = sbr.rel (%p143) target = $region12
      $region11: #{basic_block_1d.5} parent=5 // pred_region
        %s147 = ssub.s32 %s13, 1
        // Predicated region
        $region13: #{basic_block_1d.5} parent=11 // pred_check
          %p148 = pneg %p86
        $region14: #{basic_block_1d.5} parent=11 // pred_check_branch
          %150 = sbr.rel (%p148) target = $region16
        $region15: #{basic_block_1d.5} parent=11 // pred_region
          _
        $region16: #{basic_block_1d.5} parent=11 // pred_fallthru
          _
        // Predicated region
        $region17: #{basic_block_1d.5} parent=11 // pred_check
          %p151 = pneg %p107
        $region18: #{basic_block_1d.5} parent=11 // pred_check_branch
          %153 = sbr.rel (%p151) target = $region20
        $region19: #{basic_block_1d.5} parent=11 // pred_region
          _
        $region20: #{basic_block_1d.5} parent=11 // pred_fallthru
          _
      $region12: #{basic_block_1d.5} parent=5 // pred_fallthru
        _
      %p154 = scmp.lt.s32.totalorder %s13, 2
      // Predicated region
      $region21: #{basic_block_1d.5} parent=5 // pred_check
        %p155 = pneg %p154
      $region22: #{basic_block_1d.5} parent=5 // pred_check_branch
        %157 = sbr.rel (%p155) target = $region24
      $region23: #{basic_block_1d.5} parent=5 // pred_region
        // Predicated region
        $region25: #{basic_block_1d.5} parent=23 // pred_check
          %p158 = pneg %p33
        $region26: #{basic_block_1d.5} parent=23 // pred_check_branch
          %160 = sbr.rel (%p158) target = $region28
        $region27: #{basic_block_1d.5} parent=23 // pred_region
          %p161 = scmp.lt.s32.totalorder %s13, 1
          %s162 = scalar_select %p161, %s13, 1
          %s163 = smul.addr %s162, 4
          %s164 = scalar_lea.vmem %s0, %s163
        $region28: #{basic_block_1d.5} parent=23 // pred_fallthru
          _
        // Predicated region
        $region29: #{basic_block_1d.5} parent=23 // pred_check
          %p165 = pneg %p59
        $region30: #{basic_block_1d.5} parent=23 // pred_check_branch
          %167 = sbr.rel (%p165) target = $region32
        $region31: #{basic_block_1d.5} parent=23 // pred_region
          %p168 = scmp.lt.s32.totalorder %s13, 1
          %s169 = scalar_select %p168, %s13, 1
          %s170 = smul.addr %s169, 8
          %s171 = scalar_lea.vmem %s1, %s170
        $region32: #{basic_block_1d.5} parent=23 // pred_fallthru
          _
      $region24: #{basic_block_1d.5} parent=5 // pred_fallthru
        _
      %p172 = scmp.le.s32.totalorder 1, %s13
      %p173 = scmp.lt.s32.totalorder %s13, 3
      %p174 = pnand %p172, %p173
      %p175 = pneg %p174
      // Predicated region
      $region33: #{basic_block_1d.5} parent=5 // pred_check
        _
      $region34: #{basic_block_1d.5} parent=5 // pred_check_branch
        %177 = sbr.rel (%p174) target = $region36
      $region35: #{basic_block_1d.5} parent=5 // pred_region
        %s178 = ssub.s32 %s13, 1
        %p179 = scmp.lt.s32.totalorder %s18, 1
        %s180 = scalar_select %p179, %s18, 1
        %s181 = smul.addr %s180, 4
        %s182 = scalar_lea.vmem %s0, %s181
        %p183 = pneg %p39
        %p184 = pneg %p36
        %p185 = scmp.lt.s32.totalorder %s18, 1
        %s186 = scalar_select %p185, %s18, 1
        %s187 = smul.addr %s186, 8
        %s188 = scalar_lea.vmem %s1, %s187
        %p189 = pneg %p65
        %p190 = pneg %p62
        %p191 = pneg %p86
        %p192 = pneg %p83
        %p193 = pneg %p107
        %p194 = pneg %p104
        %p195 = pneg %p133
        %p196 = pneg %p130
        %s197 = sand.u32 %s120, 1
        %s198 = scalar_lea.sflag [#allocation3], %s197
        %s199 = sand.u32 %s120, 1
        %s200 = smul.addr %s199, 8
        %s201 = scalar_lea.vmem [#allocation2], %s200
        %p202 = scmp.lt.s32.totalorder %s18, 1
        %s203 = scalar_select %p202, %s18, 1
        %s204 = smul.addr %s203, 4
        %s205 = scalar_lea.vmem %s0, %s204
        %p206 = scmp.lt.s32.totalorder %s18, 1
        %s207 = scalar_select %p206, %s18, 1
        %s208 = smul.addr %s207, 8
        %s209 = scalar_lea.vmem %s1, %s208
        %v210 = vld [vmem:[%s205] sm:$0xf]
        %v211 = vunpack.c.l.bf16 %v210
        %v212 = vld [vmem:[%s2] sm:$0xff]
        %214 = vset.pattern.permute.xlu0 0
        %215 = vperm.xlu0 %214, %v212
        %v216 = vpop.permute.xlu0 %215
        %v218 = vmul.f32 %v211, %v216
        %v219 = vld [vmem:[%s3] sm:$0xff]
        %221 = vset.pattern.permute.xlu0 0
        %222 = vperm.xlu0 %221, %v219
        %v223 = vpop.permute.xlu0 %222
        %v225 = vadd.f32 %v218, %v223
        %v226 = vld [vmem:[%s209] sm:$0xff]
        %v227 = vadd.f32 %v225, %v226
        %v228 = vmax.f32 %v227, 0.0
        %229 = vst [vmem:[%s201] sm:$0xff] %v228
        %s230 = sand.u32 %s120, 1
        %s231 = scalar_lea.sflag [#allocation3], %s230
        %s232 = sand.u32 %s120, 1
        %s233 = smul.addr %s232, 8
        %s234 = scalar_lea.vmem [#allocation2], %s233
        // Predicated region
        $region37: #{basic_block_1d.5} parent=35 // pred_check
          %p235 = pneg %p130
        $region38: #{basic_block_1d.5} parent=35 // pred_check_branch
          %237 = sbr.rel (%p235) target = $region40
        $region39: #{basic_block_1d.5} parent=35 // pred_region
          %239 = vsyncadd %s231, 0
          %s240 = smul.addr %s18, 8
          %s241 = scalar_lea.hbm %s4, %s240
          %s243 = sshll.u32 %s234, 4
          %s244 = int_to_ptr.vmem [resolvable:$true] %s243
          %s245 = sshll.u32 %s241, 4
          %s246 = int_to_ptr.hbm [resolvable:$true] %s245
          %248 = dma.vmem_to_hbm [thread:$0]  %s244, 128, %s246, %s231
        $region40: #{basic_block_1d.5} parent=35 // pred_fallthru
          _
      $region36: #{basic_block_1d.5} parent=5 // pred_fallthru
        _
      %p249 = scmp.le.s32.totalorder 2, %s13
      // Predicated region
      $region41: #{basic_block_1d.5} parent=5 // pred_check
        %p250 = pneg %p249
      $region42: #{basic_block_1d.5} parent=5 // pred_check_branch
        %252 = sbr.rel (%p250) target = $region44
      $region43: #{basic_block_1d.5} parent=5 // pred_region
        %s253 = ssub.s32 %s13, 2
        // Predicated region
        $region45: #{basic_block_1d.5} parent=43 // pred_check
          %p254 = pneg %p136
        $region46: #{basic_block_1d.5} parent=43 // pred_check_branch
          %256 = sbr.rel (%p254) target = $region48
        $region47: #{basic_block_1d.5} parent=43 // pred_region
          %s257 = sand.u32 %s121, 1
          %s258 = scalar_lea.sflag [#allocation3], %s257
          %s259 = sand.u32 %s121, 1
          %s260 = smul.addr %s259, 8
          %s261 = scalar_lea.vmem [#allocation2], %s260
          %263 = dma.done %s258, 128
        $region48: #{basic_block_1d.5} parent=43 // pred_fallthru
          _
      $region44: #{basic_block_1d.5} parent=5 // pred_fallthru
        _
    $region6: #{basic_block_1d.5} parent=1 // loop_footer
      %s17 = sadd.s32 1, %s13
    $region7: #{basic_block_1d.5} parent=1 // loop_footer_branch
      %12 = sbr.rel target = $region3
    $region8: #{basic_block_1d.5} parent=1 // loop_exit
      _
    %264 = vsyncpa [#allocation3], 1
    %s265 = scalar_lea.sflag [#allocation3], 1
    %266 = vsyncpa %s265, 1

// kernel: basic_block_1d.4
$region0: #{basic_block_1d.4}
  #allocation0 [shape = 'u32[]', space=smem, size = 0x4, offset = 0x4, fixed_abs, tag = 'smem constant byte address 0x4 - core index']
  #allocation1 [shape = 'u32[72,128]{1,0:T(1,128)}', space=vmem, size = 0x9000, scoped, tag = 'internal scratch']
  %s0 = inlined_call_operand.vmem [shape: bf16[2,8,128], index: 0, kind: input, shape index: {}]
  %s1 = inlined_call_operand.vmem [shape: f32[8,1], index: 1, kind: input, shape index: {}]
  %s2 = inlined_call_operand.vmem [shape: f32[8,1], index: 2, kind: input, shape index: {}]
  %s3 = inlined_call_operand.vmem [shape: bf16[24,8], index: 3, kind: input, shape index: {}]
  %s4 = inlined_call_operand.vmem [shape: bf16[2,8,128], index: 4, kind: output, shape index: {0}]
  %s5 = inlined_call_operand.vmem [shape: f32[2,8,1], index: 5, kind: output, shape index: {1}]
  %s6 = inlined_call_operand.vmem [shape: f32[2,8,1], index: 6, kind: output, shape index: {2}]
  %7 = xla_tuple %s4, %s5, %s6
  %s8 = sld [smem:[#allocation0]]
  $region65: #{basic_block_1d.4} parent=0
    _
  %s10 = ssub.s32 1, %s8
  %s11 = scalar_select 0, %s10, %s8
  loop: start=0, step=1, limit=4
  $region2: #{basic_block_1d.4} parent=0 // loop_pre_header
    _
  $region3: #{basic_block_1d.4} parent=0 // loop_header
    %s13 = sphi 0, %s17
    %p14 = scmp.ge.s32.totalorder %s13, 4
    %s23 = sphi 0, %s25
    %s26 = sphi 0, %s23
    %s27 = sphi 0, %s26
    %s43 = sphi 0, %s27
    %s47 = sphi 0, %s47
    %s49 = sphi 0, %s47
    %s50 = sphi 0, %s49
    %s64 = sphi 0, %s50
    %s68 = sphi 0, %s68
    %s70 = sphi 0, %s68
    %s71 = sphi 0, %s70
    %s85 = sphi 0, %s71
    %s89 = sphi 0, %s89
    %s91 = sphi 0, %s89
    %s92 = sphi 0, %s91
    %s106 = sphi 0, %s92
    %s112 = sphi 0, %s114
    %s115 = sphi 0, %s112
    %s116 = sphi 0, %s115
    %s132 = sphi 0, %s116
    %s138 = sphi 0, %s140
    %s141 = sphi 0, %s138
    %s142 = sphi 0, %s141
    %s158 = sphi 0, %s142
    %s164 = sphi 0, %s166
    %s167 = sphi 0, %s164
    %s168 = sphi 0, %s167
    %s184 = sphi 0, %s168
  $region4: #{basic_block_1d.4} parent=0 // loop_header_branch
    %16 = sbr.rel (%p14) target = $region8
  $region5: #{basic_block_1d.4} parent=0 // loop_body
    %s18 = ssub.s32 %s13, 1
    %s19 = ssub.s32 %s13, 2
    %s20 = sadd.s32 %s13, 1
    %s21 = ssub.s32 %s13, %s20
    %p22 = scmp.eq.s32.totalorder %s21, 0
    %s24 = sadd.s32 %s23, 1
    %s25 = scalar_select %p22, %s23, %s24
    %p28 = pneg %p22
    %p29 = scmp.eq.s32.totalorder %s13, 1
    %p30 = por %p28, %p29
    %p31 = scmp.ne.s32.totalorder %s23, %s26
    %p32 = scmp.eq.s32.totalorder %s13, 0
    %p33 = por %p31, %p32
    %p34 = scmp.ne.s32.totalorder %s23, %s26
    %p35 = scmp.eq.s32.totalorder %s18, 1
    %p36 = por %p34, %p35
    %p37 = scmp.ne.s32.totalorder %s26, %s27
    %p38 = scmp.eq.s32.totalorder %s18, 0
    %p39 = por %p37, %p38
    %p40 = scmp.ne.s32.totalorder %s26, %s27
    %p41 = scmp.eq.s32.totalorder %s19, 1
    %p42 = por %p40, %p41
    %p44 = scmp.ne.s32.totalorder %s27, %s43
    %p45 = scmp.eq.s32.totalorder %s19, 0
    %p46 = por %p44, %p45
    %s48 = sadd.s32 %s47, 1
    %p51 = scmp.eq.s32.totalorder %s13, 1
    %p52 = scmp.ne.s32.totalorder %s47, %s49
    %p53 = scmp.eq.s32.totalorder %s13, 0
    %p54 = por %p52, %p53
    %p55 = scmp.ne.s32.totalorder %s47, %s49
    %p56 = scmp.eq.s32.totalorder %s18, 1
    %p57 = por %p55, %p56
    %p58 = scmp.ne.s32.totalorder %s49, %s50
    %p59 = scmp.eq.s32.totalorder %s18, 0
    %p60 = por %p58, %p59
    %p61 = scmp.ne.s32.totalorder %s49, %s50
    %p62 = scmp.eq.s32.totalorder %s19, 1
    %p63 = por %p61, %p62
    %p65 = scmp.ne.s32.totalorder %s50, %s64
    %p66 = scmp.eq.s32.totalorder %s19, 0
    %p67 = por %p65, %p66
    %s69 = sadd.s32 %s68, 1
    %p72 = scmp.eq.s32.totalorder %s13, 1
    %p73 = scmp.ne.s32.totalorder %s68, %s70
    %p74 = scmp.eq.s32.totalorder %s13, 0
    %p75 = por %p73, %p74
    %p76 = scmp.ne.s32.totalorder %s68, %s70
    %p77 = scmp.eq.s32.totalorder %s18, 1
    %p78 = por %p76, %p77
    %p79 = scmp.ne.s32.totalorder %s70, %s71
    %p80 = scmp.eq.s32.totalorder %s18, 0
    %p81 = por %p79, %p80
    %p82 = scmp.ne.s32.totalorder %s70, %s71
    %p83 = scmp.eq.s32.totalorder %s19, 1
    %p84 = por %p82, %p83
    %p86 = scmp.ne.s32.totalorder %s71, %s85
    %p87 = scmp.eq.s32.totalorder %s19, 0
    %p88 = por %p86, %p87
    %s90 = sadd.s32 %s89, 1
    %p93 = scmp.eq.s32.totalorder %s13, 1
    %p94 = scmp.ne.s32.totalorder %s89, %s91
    %p95 = scmp.eq.s32.totalorder %s13, 0
    %p96 = por %p94, %p95
    %p97 = scmp.ne.s32.totalorder %s89, %s91
    %p98 = scmp.eq.s32.totalorder %s18, 1
    %p99 = por %p97, %p98
    %p100 = scmp.ne.s32.totalorder %s91, %s92
    %p101 = scmp.eq.s32.totalorder %s18, 0
    %p102 = por %p100, %p101
    %p103 = scmp.ne.s32.totalorder %s91, %s92
    %p104 = scmp.eq.s32.totalorder %s19, 1
    %p105 = por %p103, %p104
    %p107 = scmp.ne.s32.totalorder %s92, %s106
    %p108 = scmp.eq.s32.totalorder %s19, 0
    %p109 = por %p107, %p108
    %s110 = ssub.s32 %s13, %s20
    %p111 = scmp.eq.s32.totalorder %s110, 0
    %s113 = sadd.s32 %s112, 1
    %s114 = scalar_select %p111, %s112, %s113
    %p117 = pneg %p111
    %p118 = scmp.eq.s32.totalorder %s13, 1
    %p119 = por %p117, %p118
    %p120 = scmp.ne.s32.totalorder %s112, %s115
    %p121 = scmp.eq.s32.totalorder %s13, 0
    %p122 = por %p120, %p121
    %p123 = scmp.ne.s32.totalorder %s112, %s115
    %p124 = scmp.eq.s32.totalorder %s18, 1
    %p125 = por %p123, %p124
    %p126 = scmp.ne.s32.totalorder %s115, %s116
    %p127 = scmp.eq.s32.totalorder %s18, 0
    %p128 = por %p126, %p127
    %p129 = scmp.ne.s32.totalorder %s115, %s116
    %p130 = scmp.eq.s32.totalorder %s19, 1
    %p131 = por %p129, %p130
    %p133 = scmp.ne.s32.totalorder %s116, %s132
    %p134 = scmp.eq.s32.totalorder %s19, 0
    %p135 = por %p133, %p134
    %s136 = ssub.s32 %s13, %s20
    %p137 = scmp.eq.s32.totalorder %s136, 0
    %s139 = sadd.s32 %s138, 1
    %s140 = scalar_select %p137, %s138, %s139
    %p143 = pneg %p137
    %p144 = scmp.eq.s32.totalorder %s13, 1
    %p145 = por %p143, %p144
    %p146 = scmp.ne.s32.totalorder %s138, %s141
    %p147 = scmp.eq.s32.totalorder %s13, 0
    %p148 = por %p146, %p147
    %p149 = scmp.ne.s32.totalorder %s138, %s141
    %p150 = scmp.eq.s32.totalorder %s18, 1
    %p151 = por %p149, %p150
    %p152 = scmp.ne.s32.totalorder %s141, %s142
    %p153 = scmp.eq.s32.totalorder %s18, 0
    %p154 = por %p152, %p153
    %p155 = scmp.ne.s32.totalorder %s141, %s142
    %p156 = scmp.eq.s32.totalorder %s19, 1
    %p157 = por %p155, %p156
    %p159 = scmp.ne.s32.totalorder %s142, %s158
    %p160 = scmp.eq.s32.totalorder %s19, 0
    %p161 = por %p159, %p160
    %s162 = ssub.s32 %s13, %s20
    %p163 = scmp.eq.s32.totalorder %s162, 0
    %s165 = sadd.s32 %s164, 1
    %s166 = scalar_select %p163, %s164, %s165
    %p169 = pneg %p163
    %p170 = scmp.eq.s32.totalorder %s13, 1
    %p171 = por %p169, %p170
    %p172 = scmp.ne.s32.totalorder %s164, %s167
    %p173 = scmp.eq.s32.totalorder %s13, 0
    %p174 = por %p172, %p173
    %p175 = scmp.ne.s32.totalorder %s164, %s167
    %p176 = scmp.eq.s32.totalorder %s18, 1
    %p177 = por %p175, %p176
    %p178 = scmp.ne.s32.totalorder %s167, %s168
    %p179 = scmp.eq.s32.totalorder %s18, 0
    %p180 = por %p178, %p179
    %p181 = scmp.ne.s32.totalorder %s167, %s168
    %p182 = scmp.eq.s32.totalorder %s19, 1
    %p183 = por %p181, %p182
    %p185 = scmp.ne.s32.totalorder %s168, %s184
    %p186 = scmp.eq.s32.totalorder %s19, 0
    %p187 = por %p185, %p186
    %p188 = scmp.le.s32.totalorder 1, %s13
    %p189 = scmp.lt.s32.totalorder %s13, 3
    %p190 = pnand %p188, %p189
    %p191 = pneg %p190
    // Predicated region
    $region9: #{basic_block_1d.4} parent=5 // pred_check
      _
    $region10: #{basic_block_1d.4} parent=5 // pred_check_branch
      %193 = sbr.rel (%p190) target = $region12
    $region11: #{basic_block_1d.4} parent=5 // pred_region
      %s194 = ssub.s32 %s13, 1
      // Predicated region
      $region13: #{basic_block_1d.4} parent=11 // pred_check
        %p195 = pneg %p60
      $region14: #{basic_block_1d.4} parent=11 // pred_check_branch
        %197 = sbr.rel (%p195) target = $region16
      $region15: #{basic_block_1d.4} parent=11 // pred_region
        _
      $region16: #{basic_block_1d.4} parent=11 // pred_fallthru
        _
      // Predicated region
      $region17: #{basic_block_1d.4} parent=11 // pred_check
        %p198 = pneg %p81
      $region18: #{basic_block_1d.4} parent=11 // pred_check_branch
        %200 = sbr.rel (%p198) target = $region20
      $region19: #{basic_block_1d.4} parent=11 // pred_region
        _
      $region20: #{basic_block_1d.4} parent=11 // pred_fallthru
        _
      // Predicated region
      $region21: #{basic_block_1d.4} parent=11 // pred_check
        %p201 = pneg %p102
      $region22: #{basic_block_1d.4} parent=11 // pred_check_branch
        %203 = sbr.rel (%p201) target = $region24
      $region23: #{basic_block_1d.4} parent=11 // pred_region
        _
      $region24: #{basic_block_1d.4} parent=11 // pred_fallthru
        _
    $region12: #{basic_block_1d.4} parent=5 // pred_fallthru
      _
    %p204 = scmp.lt.s32.totalorder %s13, 2
    // Predicated region
    $region25: #{basic_block_1d.4} parent=5 // pred_check
      %p205 = pneg %p204
    $region26: #{basic_block_1d.4} parent=5 // pred_check_branch
      %207 = sbr.rel (%p205) target = $region28
    $region27: #{basic_block_1d.4} parent=5 // pred_region
      // Predicated region
      $region29: #{basic_block_1d.4} parent=27 // pred_check
        %p208 = pneg %p33
      $region30: #{basic_block_1d.4} parent=27 // pred_check_branch
        %210 = sbr.rel (%p208) target = $region32
      $region31: #{basic_block_1d.4} parent=27 // pred_region
        %p211 = scmp.lt.s32.totalorder %s13, 1
        %s212 = scalar_select %p211, %s13, 1
        %s213 = smul.addr %s212, 4
        %s214 = scalar_lea.vmem %s0, %s213
      $region32: #{basic_block_1d.4} parent=27 // pred_fallthru
        _
    $region28: #{basic_block_1d.4} parent=5 // pred_fallthru
      _
    %p215 = scmp.le.s32.totalorder 1, %s13
    %p216 = scmp.lt.s32.totalorder %s13, 3
    %p217 = pnand %p215, %p216
    %p218 = pneg %p217
    // Predicated region
    $region33: #{basic_block_1d.4} parent=5 // pred_check
      _
    $region34: #{basic_block_1d.4} parent=5 // pred_check_branch
      %220 = sbr.rel (%p217) target = $region36
    $region35: #{basic_block_1d.4} parent=5 // pred_region
      %s221 = ssub.s32 %s13, 1
      %p222 = scmp.lt.s32.totalorder %s18, 1
      %s223 = scalar_select %p222, %s18, 1
      %s224 = smul.addr %s223, 4
      %s225 = scalar_lea.vmem %s0, %s224
      %p226 = pneg %p39
      %p227 = pneg %p36
      %p228 = pneg %p60
      %p229 = pneg %p57
      %p230 = pneg %p81
      %p231 = pneg %p78
      %p232 = pneg %p102
      %p233 = pneg %p99
      %p234 = pneg %p128
      %p235 = pneg %p125
      %p236 = scmp.lt.s32.totalorder %s18, 1
      %s237 = scalar_select %p236, %s18, 1
      %s238 = smul.addr %s237, 4
      %s239 = scalar_lea.vmem %s4, %s238
      %p240 = pneg %p154
      %p241 = pneg %p151
      %p242 = scmp.lt.s32.totalorder %s18, 1
      %s243 = scalar_select %p242, %s18, 1
      %s244 = smul.addr %s243, 8
      %s245 = scalar_lea.vmem %s5, %s244
      %p246 = pneg %p180
      %p247 = pneg %p177
      %p248 = scmp.lt.s32.totalorder %s18, 1
      %s249 = scalar_select %p248, %s18, 1
      %s250 = smul.addr %s249, 8
      %s251 = scalar_lea.vmem %s6, %s250
      %p252 = scmp.lt.s32.totalorder %s18, 1
      %s253 = scalar_select %p252, %s18, 1
      %s254 = smul.addr %s253, 4
      %s255 = scalar_lea.vmem %s0, %s254
      %p256 = scmp.lt.s32.totalorder %s18, 1
      %s257 = scalar_select %p256, %s18, 1
      %s258 = smul.addr %s257, 4
      %s259 = scalar_lea.vmem %s4, %s258
      %p260 = scmp.lt.s32.totalorder %s18, 1
      %s261 = scalar_select %p260, %s18, 1
      %s262 = smul.addr %s261, 8
      %s263 = scalar_lea.vmem %s5, %s262
      %p264 = scmp.lt.s32.totalorder %s18, 1
      %s265 = scalar_select %p264, %s18, 1
      %s266 = smul.addr %s265, 8
      %s267 = scalar_lea.vmem %s6, %s266
      %v269 = vld [vmem:[%s255] sm:$0xf]
      %v270 = vunpack.c.l.bf16 %v269
      %v271 = vld [vmem:[%s1] sm:$0xff]
      %273 = vset.pattern.permute.xlu0 0
      %274 = vperm.xlu0 %273, %v271
      %v275 = vpop.permute.xlu0 %274
      %v277 = vmul.f32 %v270, %v275
      %v278 = vld [vmem:[%s2] sm:$0xff]
      %280 = vset.pattern.permute.xlu0 0
      %281 = vperm.xlu0 %280, %v278
      %v282 = vpop.permute.xlu0 %281
      %v284 = vadd.f32 %v277, %v282
      %v285 = vmax.f32 %v284, 0.0
      %v286 = vlaneseq
      %v287 = vand.u32 %v286, 127
      %vm288 = vcmp.lt.s32.totalorder %v287, 16
      %v289 = vsel %vm288, %v285, 0.0
      %v290 = vpack.c.bf16 %v289, %v289
      %v291 = vld [vmem:[%s3] sm:$0xf]
      %v292 = vld [vmem:[%s3 + $0x4] sm:$0xf]
      %v293 = vld [vmem:[%s3 + $0x8] sm:$0xf]
      %v297 = vunpack.c.l.b16 %v291
      %v298 = vunpack.c.l.b16 %v292
      %v299 = vunpack.c.l.b16 %v293
      %v300 = vpack.c.b16 %v298, %v297
      %v301 = vpack.c.b16 %v299, %v299
      %vm302 = vcmask 64512
      %v304 = vsel %vm302, %v300, 0
      %v307 = vsel %vm302, %v301, 0
      %vm309 = vcmask 1043456
      %v311 = vsel %vm309, %v290, 0
      %313 = vmatpush.bf16.msra.mxu0 0
      %314 = vmatpush.bf16.msra.mxu0 0
      %315 = vmatpush.bf16.msra.mxu0 0
      %316 = vmatpush.bf16.msra.mxu0 0
      %317 = vmatpush.bf16.msra.mxu0 0
      %318 = vmatpush.bf16.msra.mxu0 0
      %319 = vmatpush.bf16.msra.mxu0 0
      %320 = vmatpush.bf16.msra.mxu0 %v311
      %321 = vmatmul.bf16.gmra.mxu0 %v304
      %v322 = vpop.f32.mrf.mxu0
      %v323 = vadd.f32 0.0, %v322
      %v324 = vpop.f32.mrf.mxu0
      %v325 = vadd.f32 0.0, %v324
      %326 = vmatmul.bf16.gmra.mxu0 %v307
      %v327 = vpop.f32.mrf.mxu0
      %v328 = vadd.f32 0.0, %v327
      %v329 = vpop.f32.mrf.mxu0
      %330 = vdwg.mxu0
      %331 = vrot.lane.b32.xlu0 %v323, 1
      %v332 = vpop.permute.xlu0 %331
      %v333 = vadd.f32 %v325, %v332
      %334 = vrot.lane.b32.xlu0 %v328, 127
      %v335 = vpop.permute.xlu0 %334
      %v336 = vadd.f32 %v333, %v335
      %v337 = vsel %vm288, %v336, 0.0
      %338 = vadd.xlane.f32.xlu0 %v337
      %v339 = vpop.xlane.xlu0 %338
      %v340 = vmul.f32 %v337, %v337
      %341 = vadd.xlane.f32.xlu0 %v340
      %v342 = vpop.xlane.xlu0 %341
      %vm343 = vcmask 7168
      %344 = vst.msk [vmem:[%s263] sm:$0xff] %vm343, %v339
      %345 = vst.msk [vmem:[%s267] sm:$0xff] %vm343, %v342
      %v346 = vpack.c.bf16 %v336, %v336
      %347 = vst [vmem:[%s259] sm:$0xf] %v346
      %p348 = scmp.lt.s32.totalorder %s18, 1
      %s349 = scalar_select %p348, %s18, 1
      %s350 = smul.addr %s349, 4
      %s351 = scalar_lea.vmem %s4, %s350
      %p352 = scmp.lt.s32.totalorder %s18, 1
      %s353 = scalar_select %p352, %s18, 1
      %s354 = smul.addr %s353, 8
      %s355 = scalar_lea.vmem %s5, %s354
      %p356 = scmp.lt.s32.totalorder %s18, 1
      %s357 = scalar_select %p356, %s18, 1
      %s358 = smul.addr %s357, 8
      %s359 = scalar_lea.vmem %s6, %s358
      // Predicated region
      $region37: #{basic_block_1d.4} parent=35 // pred_check
        %p360 = pneg %p125
      $region38: #{basic_block_1d.4} parent=35 // pred_check_branch
        %362 = sbr.rel (%p360) target = $region40
      $region39: #{basic_block_1d.4} parent=35 // pred_region
        _
      $region40: #{basic_block_1d.4} parent=35 // pred_fallthru
        _
      // Predicated region
      $region41: #{basic_block_1d.4} parent=35 // pred_check
        %p363 = pneg %p151
      $region42: #{basic_block_1d.4} parent=35 // pred_check_branch
        %365 = sbr.rel (%p363) target = $region44
      $region43: #{basic_block_1d.4} parent=35 // pred_region
        _
      $region44: #{basic_block_1d.4} parent=35 // pred_fallthru
        _
      // Predicated region
      $region45: #{basic_block_1d.4} parent=35 // pred_check
        %p366 = pneg %p177
      $region46: #{basic_block_1d.4} parent=35 // pred_check_branch
        %368 = sbr.rel (%p366) target = $region48
      $region47: #{basic_block_1d.4} parent=35 // pred_region
        _
      $region48: #{basic_block_1d.4} parent=35 // pred_fallthru
        _
    $region36: #{basic_block_1d.4} parent=5 // pred_fallthru
      _
    %p369 = scmp.le.s32.totalorder 2, %s13
    // Predicated region
    $region49: #{basic_block_1d.4} parent=5 // pred_check
      %p370 = pneg %p369
    $region50: #{basic_block_1d.4} parent=5 // pred_check_branch
      %372 = sbr.rel (%p370) target = $region52
    $region51: #{basic_block_1d.4} parent=5 // pred_region
      %s373 = ssub.s32 %s13, 2
      // Predicated region
      $region53: #{basic_block_1d.4} parent=51 // pred_check
        %p374 = pneg %p131
      $region54: #{basic_block_1d.4} parent=51 // pred_check_branch
        %376 = sbr.rel (%p374) target = $region56
      $region55: #{basic_block_1d.4} parent=51 // pred_region
        %p377 = scmp.lt.s32.totalorder %s19, 1
        %s378 = scalar_select %p377, %s19, 1
        %s379 = smul.addr %s378, 4
        %s380 = scalar_lea.vmem %s4, %s379
      $region56: #{basic_block_1d.4} parent=51 // pred_fallthru
        _
      // Predicated region
      $region57: #{basic_block_1d.4} parent=51 // pred_check
        %p381 = pneg %p157
      $region58: #{basic_block_1d.4} parent=51 // pred_check_branch
        %383 = sbr.rel (%p381) target = $region60
      $region59: #{basic_block_1d.4} parent=51 // pred_region
        %p384 = scmp.lt.s32.totalorder %s19, 1
        %s385 = scalar_select %p384, %s19, 1
        %s386 = smul.addr %s385, 8
        %s387 = scalar_lea.vmem %s5, %s386
      $region60: #{basic_block_1d.4} parent=51 // pred_fallthru
        _
      // Predicated region
      $region61: #{basic_block_1d.4} parent=51 // pred_check
        %p388 = pneg %p183
      $region62: #{basic_block_1d.4} parent=51 // pred_check_branch
        %390 = sbr.rel (%p388) target = $region64
      $region63: #{basic_block_1d.4} parent=51 // pred_region
        %p391 = scmp.lt.s32.totalorder %s19, 1
        %s392 = scalar_select %p391, %s19, 1
        %s393 = smul.addr %s392, 8
        %s394 = scalar_lea.vmem %s6, %s393
      $region64: #{basic_block_1d.4} parent=51 // pred_fallthru
        _
    $region52: #{basic_block_1d.4} parent=5 // pred_fallthru
      _
  $region6: #{basic_block_1d.4} parent=0 // loop_footer
    %s17 = sadd.s32 1, %s13
  $region7: #{basic_block_1d.4} parent=0 // loop_footer_branch
    %12 = sbr.rel target = $region3
  $region8: #{basic_block_1d.4} parent=0 // loop_exit
    _

// kernel: basic_block_1d.3
$region0: #{basic_block_1d.3}
  #allocation0 [shape = 'u32[]', space=smem, size = 0x4, offset = 0x4, fixed_abs, tag = 'smem constant byte address 0x4 - core index']
  #allocation1 [shape = 'u32[72,128]{1,0:T(1,128)}', space=vmem, size = 0x9000, scoped, tag = 'internal scratch']
  %s0 = inlined_call_operand.vmem [shape: bf16[2,8,128], index: 0, kind: input, shape index: {}]
  %s1 = inlined_call_operand.vmem [shape: bf16[24,8], index: 1, kind: input, shape index: {}]
  %s2 = inlined_call_operand.vmem [shape: bf16[2,8,128], index: 2, kind: output, shape index: {0}]
  %s3 = inlined_call_operand.vmem [shape: f32[2,8,1], index: 3, kind: output, shape index: {1}]
  %s4 = inlined_call_operand.vmem [shape: f32[2,8,1], index: 4, kind: output, shape index: {2}]
  %5 = xla_tuple %s2, %s3, %s4
  %s6 = sld [smem:[#allocation0]]
  $region57: #{basic_block_1d.3} parent=0
    _
  %s8 = ssub.s32 1, %s6
  %s9 = scalar_select 0, %s8, %s6
  loop: start=0, step=1, limit=4
  $region2: #{basic_block_1d.3} parent=0 // loop_pre_header
    _
  $region3: #{basic_block_1d.3} parent=0 // loop_header
    %s11 = sphi 0, %s15
    %p12 = scmp.ge.s32.totalorder %s11, 4
    %s21 = sphi 0, %s23
    %s24 = sphi 0, %s21
    %s25 = sphi 0, %s24
    %s41 = sphi 0, %s25
    %s45 = sphi 0, %s45
    %s47 = sphi 0, %s45
    %s48 = sphi 0, %s47
    %s62 = sphi 0, %s48
    %s68 = sphi 0, %s70
    %s71 = sphi 0, %s68
    %s72 = sphi 0, %s71
    %s88 = sphi 0, %s72
    %s94 = sphi 0, %s96
    %s97 = sphi 0, %s94
    %s98 = sphi 0, %s97
    %s114 = sphi 0, %s98
    %s120 = sphi 0, %s122
    %s123 = sphi 0, %s120
    %s124 = sphi 0, %s123
    %s140 = sphi 0, %s124
  $region4: #{basic_block_1d.3} parent=0 // loop_header_branch
    %14 = sbr.rel (%p12) target = $region8
  $region5: #{basic_block_1d.3} parent=0 // loop_body
    %s16 = ssub.s32 %s11, 1
    %s17 = ssub.s32 %s11, 2
    %s18 = sadd.s32 %s11, 1
    %s19 = ssub.s32 %s11, %s18
    %p20 = scmp.eq.s32.totalorder %s19, 0
    %s22 = sadd.s32 %s21, 1
    %s23 = scalar_select %p20, %s21, %s22
    %p26 = pneg %p20
    %p27 = scmp.eq.s32.totalorder %s11, 1
    %p28 = por %p26, %p27
    %p29 = scmp.ne.s32.totalorder %s21, %s24
    %p30 = scmp.eq.s32.totalorder %s11, 0
    %p31 = por %p29, %p30
    %p32 = scmp.ne.s32.totalorder %s21, %s24
    %p33 = scmp.eq.s32.totalorder %s16, 1
    %p34 = por %p32, %p33
    %p35 = scmp.ne.s32.totalorder %s24, %s25
    %p36 = scmp.eq.s32.totalorder %s16, 0
    %p37 = por %p35, %p36
    %p38 = scmp.ne.s32.totalorder %s24, %s25
    %p39 = scmp.eq.s32.totalorder %s17, 1
    %p40 = por %p38, %p39
    %p42 = scmp.ne.s32.totalorder %s25, %s41
    %p43 = scmp.eq.s32.totalorder %s17, 0
    %p44 = por %p42, %p43
    %s46 = sadd.s32 %s45, 1
    %p49 = scmp.eq.s32.totalorder %s11, 1
    %p50 = scmp.ne.s32.totalorder %s45, %s47
    %p51 = scmp.eq.s32.totalorder %s11, 0
    %p52 = por %p50, %p51
    %p53 = scmp.ne.s32.totalorder %s45, %s47
    %p54 = scmp.eq.s32.totalorder %s16, 1
    %p55 = por %p53, %p54
    %p56 = scmp.ne.s32.totalorder %s47, %s48
    %p57 = scmp.eq.s32.totalorder %s16, 0
    %p58 = por %p56, %p57
    %p59 = scmp.ne.s32.totalorder %s47, %s48
    %p60 = scmp.eq.s32.totalorder %s17, 1
    %p61 = por %p59, %p60
    %p63 = scmp.ne.s32.totalorder %s48, %s62
    %p64 = scmp.eq.s32.totalorder %s17, 0
    %p65 = por %p63, %p64
    %s66 = ssub.s32 %s11, %s18
    %p67 = scmp.eq.s32.totalorder %s66, 0
    %s69 = sadd.s32 %s68, 1
    %s70 = scalar_select %p67, %s68, %s69
    %p73 = pneg %p67
    %p74 = scmp.eq.s32.totalorder %s11, 1
    %p75 = por %p73, %p74
    %p76 = scmp.ne.s32.totalorder %s68, %s71
    %p77 = scmp.eq.s32.totalorder %s11, 0
    %p78 = por %p76, %p77
    %p79 = scmp.ne.s32.totalorder %s68, %s71
    %p80 = scmp.eq.s32.totalorder %s16, 1
    %p81 = por %p79, %p80
    %p82 = scmp.ne.s32.totalorder %s71, %s72
    %p83 = scmp.eq.s32.totalorder %s16, 0
    %p84 = por %p82, %p83
    %p85 = scmp.ne.s32.totalorder %s71, %s72
    %p86 = scmp.eq.s32.totalorder %s17, 1
    %p87 = por %p85, %p86
    %p89 = scmp.ne.s32.totalorder %s72, %s88
    %p90 = scmp.eq.s32.totalorder %s17, 0
    %p91 = por %p89, %p90
    %s92 = ssub.s32 %s11, %s18
    %p93 = scmp.eq.s32.totalorder %s92, 0
    %s95 = sadd.s32 %s94, 1
    %s96 = scalar_select %p93, %s94, %s95
    %p99 = pneg %p93
    %p100 = scmp.eq.s32.totalorder %s11, 1
    %p101 = por %p99, %p100
    %p102 = scmp.ne.s32.totalorder %s94, %s97
    %p103 = scmp.eq.s32.totalorder %s11, 0
    %p104 = por %p102, %p103
    %p105 = scmp.ne.s32.totalorder %s94, %s97
    %p106 = scmp.eq.s32.totalorder %s16, 1
    %p107 = por %p105, %p106
    %p108 = scmp.ne.s32.totalorder %s97, %s98
    %p109 = scmp.eq.s32.totalorder %s16, 0
    %p110 = por %p108, %p109
    %p111 = scmp.ne.s32.totalorder %s97, %s98
    %p112 = scmp.eq.s32.totalorder %s17, 1
    %p113 = por %p111, %p112
    %p115 = scmp.ne.s32.totalorder %s98, %s114
    %p116 = scmp.eq.s32.totalorder %s17, 0
    %p117 = por %p115, %p116
    %s118 = ssub.s32 %s11, %s18
    %p119 = scmp.eq.s32.totalorder %s118, 0
    %s121 = sadd.s32 %s120, 1
    %s122 = scalar_select %p119, %s120, %s121
    %p125 = pneg %p119
    %p126 = scmp.eq.s32.totalorder %s11, 1
    %p127 = por %p125, %p126
    %p128 = scmp.ne.s32.totalorder %s120, %s123
    %p129 = scmp.eq.s32.totalorder %s11, 0
    %p130 = por %p128, %p129
    %p131 = scmp.ne.s32.totalorder %s120, %s123
    %p132 = scmp.eq.s32.totalorder %s16, 1
    %p133 = por %p131, %p132
    %p134 = scmp.ne.s32.totalorder %s123, %s124
    %p135 = scmp.eq.s32.totalorder %s16, 0
    %p136 = por %p134, %p135
    %p137 = scmp.ne.s32.totalorder %s123, %s124
    %p138 = scmp.eq.s32.totalorder %s17, 1
    %p139 = por %p137, %p138
    %p141 = scmp.ne.s32.totalorder %s124, %s140
    %p142 = scmp.eq.s32.totalorder %s17, 0
    %p143 = por %p141, %p142
    %p144 = scmp.le.s32.totalorder 1, %s11
    %p145 = scmp.lt.s32.totalorder %s11, 3
    %p146 = pnand %p144, %p145
    %p147 = pneg %p146
    // Predicated region
    $region9: #{basic_block_1d.3} parent=5 // pred_check
      _
    $region10: #{basic_block_1d.3} parent=5 // pred_check_branch
      %149 = sbr.rel (%p146) target = $region12
    $region11: #{basic_block_1d.3} parent=5 // pred_region
      %s150 = ssub.s32 %s11, 1
      // Predicated region
      $region13: #{basic_block_1d.3} parent=11 // pred_check
        %p151 = pneg %p58
      $region14: #{basic_block_1d.3} parent=11 // pred_check_branch
        %153 = sbr.rel (%p151) target = $region16
      $region15: #{basic_block_1d.3} parent=11 // pred_region
        _
      $region16: #{basic_block_1d.3} parent=11 // pred_fallthru
        _
    $region12: #{basic_block_1d.3} parent=5 // pred_fallthru
      _
    %p154 = scmp.lt.s32.totalorder %s11, 2
    // Predicated region
    $region17: #{basic_block_1d.3} parent=5 // pred_check
      %p155 = pneg %p154
    $region18: #{basic_block_1d.3} parent=5 // pred_check_branch
      %157 = sbr.rel (%p155) target = $region20
    $region19: #{basic_block_1d.3} parent=5 // pred_region
      // Predicated region
      $region21: #{basic_block_1d.3} parent=19 // pred_check
        %p158 = pneg %p31
      $region22: #{basic_block_1d.3} parent=19 // pred_check_branch
        %160 = sbr.rel (%p158) target = $region24
      $region23: #{basic_block_1d.3} parent=19 // pred_region
        %p161 = scmp.lt.s32.totalorder %s11, 1
        %s162 = scalar_select %p161, %s11, 1
        %s163 = smul.addr %s162, 4
        %s164 = scalar_lea.vmem %s0, %s163
      $region24: #{basic_block_1d.3} parent=19 // pred_fallthru
        _
    $region20: #{basic_block_1d.3} parent=5 // pred_fallthru
      _
    %p165 = scmp.le.s32.totalorder 1, %s11
    %p166 = scmp.lt.s32.totalorder %s11, 3
    %p167 = pnand %p165, %p166
    %p168 = pneg %p167
    // Predicated region
    $region25: #{basic_block_1d.3} parent=5 // pred_check
      _
    $region26: #{basic_block_1d.3} parent=5 // pred_check_branch
      %170 = sbr.rel (%p167) target = $region28
    $region27: #{basic_block_1d.3} parent=5 // pred_region
      %s171 = ssub.s32 %s11, 1
      %p172 = scmp.lt.s32.totalorder %s16, 1
      %s173 = scalar_select %p172, %s16, 1
      %s174 = smul.addr %s173, 4
      %s175 = scalar_lea.vmem %s0, %s174
      %p176 = pneg %p37
      %p177 = pneg %p34
      %p178 = pneg %p58
      %p179 = pneg %p55
      %p180 = pneg %p84
      %p181 = pneg %p81
      %p182 = scmp.lt.s32.totalorder %s16, 1
      %s183 = scalar_select %p182, %s16, 1
      %s184 = smul.addr %s183, 4
      %s185 = scalar_lea.vmem %s2, %s184
      %p186 = pneg %p110
      %p187 = pneg %p107
      %p188 = scmp.lt.s32.totalorder %s16, 1
      %s189 = scalar_select %p188, %s16, 1
      %s190 = smul.addr %s189, 8
      %s191 = scalar_lea.vmem %s3, %s190
      %p192 = pneg %p136
      %p193 = pneg %p133
      %p194 = scmp.lt.s32.totalorder %s16, 1
      %s195 = scalar_select %p194, %s16, 1
      %s196 = smul.addr %s195, 8
      %s197 = scalar_lea.vmem %s4, %s196
      %p198 = scmp.lt.s32.totalorder %s16, 1
      %s199 = scalar_select %p198, %s16, 1
      %s200 = smul.addr %s199, 4
      %s201 = scalar_lea.vmem %s0, %s200
      %p202 = scmp.lt.s32.totalorder %s16, 1
      %s203 = scalar_select %p202, %s16, 1
      %s204 = smul.addr %s203, 4
      %s205 = scalar_lea.vmem %s2, %s204
      %p206 = scmp.lt.s32.totalorder %s16, 1
      %s207 = scalar_select %p206, %s16, 1
      %s208 = smul.addr %s207, 8
      %s209 = scalar_lea.vmem %s3, %s208
      %p210 = scmp.lt.s32.totalorder %s16, 1
      %s211 = scalar_select %p210, %s16, 1
      %s212 = smul.addr %s211, 8
      %s213 = scalar_lea.vmem %s4, %s212
      %v215 = vld [vmem:[%s201] sm:$0xf]
      %v216 = vld [vmem:[%s1] sm:$0xf]
      %v217 = vld [vmem:[%s1 + $0x4] sm:$0xf]
      %v218 = vld [vmem:[%s1 + $0x8] sm:$0xf]
      %v222 = vunpack.c.l.b16 %v216
      %v223 = vunpack.c.l.b16 %v217
      %v224 = vunpack.c.l.b16 %v218
      %v225 = vpack.c.b16 %v223, %v222
      %v226 = vpack.c.b16 %v224, %v224
      %vm227 = vcmask 64512
      %v229 = vsel %vm227, %v225, 0
      %v232 = vsel %vm227, %v226, 0
      %vm234 = vcmask 1043456
      %v236 = vsel %vm234, %v215, 0
      %238 = vmatpush.bf16.msra.mxu0 0
      %239 = vmatpush.bf16.msra.mxu0 0
      %240 = vmatpush.bf16.msra.mxu0 0
      %241 = vmatpush.bf16.msra.mxu0 0
      %242 = vmatpush.bf16.msra.mxu0 0
      %243 = vmatpush.bf16.msra.mxu0 0
      %244 = vmatpush.bf16.msra.mxu0 0
      %245 = vmatpush.bf16.msra.mxu0 %v236
      %246 = vmatmul.bf16.gmra.mxu0 %v229
      %v247 = vpop.f32.mrf.mxu0
      %v248 = vadd.f32 0.0, %v247
      %v249 = vpop.f32.mrf.mxu0
      %v250 = vadd.f32 0.0, %v249
      %251 = vmatmul.bf16.gmra.mxu0 %v232
      %v252 = vpop.f32.mrf.mxu0
      %v253 = vadd.f32 0.0, %v252
      %v254 = vpop.f32.mrf.mxu0
      %255 = vdwg.mxu0
      %256 = vrot.lane.b32.xlu0 %v248, 1
      %v257 = vpop.permute.xlu0 %256
      %v258 = vadd.f32 %v250, %v257
      %259 = vrot.lane.b32.xlu0 %v253, 127
      %v260 = vpop.permute.xlu0 %259
      %v261 = vadd.f32 %v258, %v260
      %v262 = vlaneseq
      %v263 = vand.u32 %v262, 127
      %vm264 = vcmp.lt.s32.totalorder %v263, 16
      %v265 = vsel %vm264, %v261, 0.0
      %266 = vadd.xlane.f32.xlu0 %v265
      %v267 = vpop.xlane.xlu0 %266
      %v268 = vmul.f32 %v265, %v265
      %269 = vadd.xlane.f32.xlu0 %v268
      %v270 = vpop.xlane.xlu0 %269
      %vm271 = vcmask 7168
      %272 = vst.msk [vmem:[%s209] sm:$0xff] %vm271, %v267
      %273 = vst.msk [vmem:[%s213] sm:$0xff] %vm271, %v270
      %v274 = vpack.c.bf16 %v261, %v261
      %275 = vst [vmem:[%s205] sm:$0xf] %v274
      %p276 = scmp.lt.s32.totalorder %s16, 1
      %s277 = scalar_select %p276, %s16, 1
      %s278 = smul.addr %s277, 4
      %s279 = scalar_lea.vmem %s2, %s278
      %p280 = scmp.lt.s32.totalorder %s16, 1
      %s281 = scalar_select %p280, %s16, 1
      %s282 = smul.addr %s281, 8
      %s283 = scalar_lea.vmem %s3, %s282
      %p284 = scmp.lt.s32.totalorder %s16, 1
      %s285 = scalar_select %p284, %s16, 1
      %s286 = smul.addr %s285, 8
      %s287 = scalar_lea.vmem %s4, %s286
      // Predicated region
      $region29: #{basic_block_1d.3} parent=27 // pred_check
        %p288 = pneg %p81
      $region30: #{basic_block_1d.3} parent=27 // pred_check_branch
        %290 = sbr.rel (%p288) target = $region32
      $region31: #{basic_block_1d.3} parent=27 // pred_region
        _
      $region32: #{basic_block_1d.3} parent=27 // pred_fallthru
        _
      // Predicated region
      $region33: #{basic_block_1d.3} parent=27 // pred_check
        %p291 = pneg %p107
      $region34: #{basic_block_1d.3} parent=27 // pred_check_branch
        %293 = sbr.rel (%p291) target = $region36
      $region35: #{basic_block_1d.3} parent=27 // pred_region
        _
      $region36: #{basic_block_1d.3} parent=27 // pred_fallthru
        _
      // Predicated region
      $region37: #{basic_block_1d.3} parent=27 // pred_check
        %p294 = pneg %p133
      $region38: #{basic_block_1d.3} parent=27 // pred_check_branch
        %296 = sbr.rel (%p294) target = $region40
      $region39: #{basic_block_1d.3} parent=27 // pred_region
        _
      $region40: #{basic_block_1d.3} parent=27 // pred_fallthru
        _
    $region28: #{basic_block_1d.3} parent=5 // pred_fallthru
      _
    %p297 = scmp.le.s32.totalorder 2, %s11
    // Predicated region
    $region41: #{basic_block_1d.3} parent=5 // pred_check
      %p298 = pneg %p297
    $region42: #{basic_block_1d.3} parent=5 // pred_check_branch
      %300 = sbr.rel (%p298) target = $region44
    $region43: #{basic_block_1d.3} parent=5 // pred_region
      %s301 = ssub.s32 %s11, 2
      // Predicated region
      $region45: #{basic_block_1d.3} parent=43 // pred_check
        %p302 = pneg %p87
      $region46: #{basic_block_1d.3} parent=43 // pred_check_branch
        %304 = sbr.rel (%p302) target = $region48
      $region47: #{basic_block_1d.3} parent=43 // pred_region
        %p305 = scmp.lt.s32.totalorder %s17, 1
        %s306 = scalar_select %p305, %s17, 1
        %s307 = smul.addr %s306, 4
        %s308 = scalar_lea.vmem %s2, %s307
      $region48: #{basic_block_1d.3} parent=43 // pred_fallthru
        _
      // Predicated region
      $region49: #{basic_block_1d.3} parent=43 // pred_check
        %p309 = pneg %p113
      $region50: #{basic_block_1d.3} parent=43 // pred_check_branch
        %311 = sbr.rel (%p309) target = $region52
      $region51: #{basic_block_1d.3} parent=43 // pred_region
        %p312 = scmp.lt.s32.totalorder %s17, 1
        %s313 = scalar_select %p312, %s17, 1
        %s314 = smul.addr %s313, 8
        %s315 = scalar_lea.vmem %s3, %s314
      $region52: #{basic_block_1d.3} parent=43 // pred_fallthru
        _
      // Predicated region
      $region53: #{basic_block_1d.3} parent=43 // pred_check
        %p316 = pneg %p139
      $region54: #{basic_block_1d.3} parent=43 // pred_check_branch
        %318 = sbr.rel (%p316) target = $region56
      $region55: #{basic_block_1d.3} parent=43 // pred_region
        %p319 = scmp.lt.s32.totalorder %s17, 1
        %s320 = scalar_select %p319, %s17, 1
        %s321 = smul.addr %s320, 8
        %s322 = scalar_lea.vmem %s4, %s321
      $region56: #{basic_block_1d.3} parent=43 // pred_fallthru
        _
    $region44: #{basic_block_1d.3} parent=5 // pred_fallthru
      _
  $region6: #{basic_block_1d.3} parent=0 // loop_footer
    %s15 = sadd.s32 1, %s11
  $region7: #{basic_block_1d.3} parent=0 // loop_footer_branch
    %10 = sbr.rel target = $region3
  $region8: #{basic_block_1d.3} parent=0 // loop_exit
    _

</llo_original>
